<compile_context>
chip_gen: v7x
topology: tpu7x:2x2x1
jax: 0.10.0
libtpu: 0.0.40
codegen_flags: <defaults>
</compile_context>

<pallas_src>
import functools

import jax
import jax.numpy as jnp
from jax.experimental import pallas as pl
from jax.experimental.pallas import tpu as pltpu  # noqa: F401  (see TODOs on tiling)

LANE = 128          # TPU lane width; aux slab lane dimension
NEG_INF = -1e30     # finite "masked out" sentinel (exp underflows to 0 in f32)


# ----------------------------- Pallas kernel --------------------------------

def _fused_actor_critic_kernel(N, A,
                               x_ref, w1_ref, b1_ref, wa2_ref, ba2_ref,
                               wc2_ref, bc2_ref, mask_ref,
                               probs_ref, logp_ref, aux_ref):
    x = x_ref[...]                                                  # [N, E]

    # --- fused first layer (actor|critic share the input): one MXU push -----
    h = jnp.dot(x, w1_ref[...], preferred_element_type=jnp.float32) + b1_ref[...]
    h = jnp.maximum(h, 0.0)                                         # [N, HA+HC]

    # --- actor second layer (critic rows of Wa2 zero-padded, so no slicing) -
    logits = (jnp.dot(h, wa2_ref[...], preferred_element_type=jnp.float32)
              + ba2_ref[...])                                       # [N, A]

    # --- critic second layer: width-1 output -> VPU mul + lane reduce -------
    vals = jnp.sum(h * wc2_ref[...], axis=-1, keepdims=True) + bc2_ref[...]  # [N,1]

    # --- masked softmax over xfers (per node row) ----------------------------
    maskf = jnp.broadcast_to(mask_ref[...], (N, A))                 # [N, A] f32
    mask = maskf > 0.0
    masked = jnp.where(mask, logits, jnp.float32(NEG_INF))
    m = jnp.max(masked, axis=-1, keepdims=True)
    e = jnp.exp(masked - m) * maskf
    s = jnp.maximum(jnp.sum(e, axis=-1, keepdims=True), 1e-30)      # all-masked safe
    probs_ref[...] = e * pl.reciprocal(s, approx=True)              # EUP vrcp (free slot)
    logp_ref[...] = jnp.where(mask, masked - m - jnp.log(s), jnp.float32(NEG_INF))

    # --- node log-softmax over critic values (node sampling distribution) ---
    vmax = jnp.max(vals, axis=0, keepdims=True)                     # [1,1]
    vlse = vmax + jnp.log(jnp.sum(jnp.exp(vals - vmax), axis=0, keepdims=True))
    node_logp = vals - vlse                                         # [N,1]

    # --- lane-dense aux: rows [0,N) node values, rows [N,2N) node log-probs --
    aux_ref[:N, :] = jnp.broadcast_to(vals, (N, LANE))
    aux_ref[N:, :] = jnp.broadcast_to(node_logp, (N, LANE))


# ------------------------------ JAX wrapper ----------------------------------

def actor_critic_forward(x, fused, xfer_mask_f32):
    """Single pallas_call. Returns (probs [N,A], logp [N,A], aux [2N,128])."""
    N, _ = x.shape
    A = fused["wa2p"].shape[1]
    args = (x, fused["w1"], fused["b1"], fused["wa2p"], fused["ba2"],
            fused["wc2p"], fused["bc2"], xfer_mask_f32)
    full = lambda a: pl.BlockSpec(a.shape, lambda: (0,) * a.ndim)
    # Single block: N=8 is tiny, everything fits in one VMEM tile.
    # TODO(synk): for large N, add a grid over the node axis (128-row tiles on
    # v5e, 256 on v6e/v7x), mark it "parallel" in dimension_semantics, keep the
    # weights as full-array (grid-invariant) blocks, and budget tiles for
    # v7x's 64 MiB VMEM / 2 TensorCores.
    return pl.pallas_call(
        functools.partial(_fused_actor_critic_kernel, N, A),
        out_shape=(jax.ShapeDtypeStruct((N, A), jnp.float32),
                   jax.ShapeDtypeStruct((N, A), jnp.float32),
                   jax.ShapeDtypeStruct((2 * N, LANE), jnp.float32)),
        in_specs=[full(a) for a in args],
        out_specs=(pl.BlockSpec((N, A), lambda: (0, 0)),
                   pl.BlockSpec((N, A), lambda: (0, 0)),
                   pl.BlockSpec((2 * N, LANE), lambda: (0, 0))),
    )(*args)


# --------------------------- parameter construction --------------------------

def xavier_uniform(key, fan_in, fan_out, gain):
    bound = gain * jnp.sqrt(6.0 / (fan_in + fan_out))
    return jax.random.uniform(key, (fan_in, fan_out), jnp.float32, -bound, bound)


def make_params(key, embed_size, actor_hidden, critic_hidden, action_dim):
    """Weights stored [in, out] (= transpose of PyTorch nn.Linear's [out, in])."""
    gain = jnp.sqrt(2.0)  # nn.init.calculate_gain('relu')
    k = jax.random.split(key, 4)
    return {
        "wa1": xavier_uniform(k[0], embed_size, actor_hidden, gain),
        "ba1": jnp.zeros((1, actor_hidden), jnp.float32),
        "wa2": xavier_uniform(k[1], actor_hidden, action_dim, gain),
        "ba2": jnp.zeros((1, action_dim), jnp.float32),
        "wc1": xavier_uniform(k[2], embed_size, critic_hidden, gain),
        "bc1": jnp.zeros((1, critic_hidden), jnp.float32),
        "wc2": xavier_uniform(k[3], critic_hidden, 1, gain),
        "bc2": jnp.zeros((1, 1), jnp.float32),
    }


def fuse_params(p):
    """Build fused/zero-padded kernel operands once, outside the kernel."""
    HA = p["wa1"].shape[1]
    HC = p["wc1"].shape[1]
    A = p["wa2"].shape[1]
    return {
        "w1": jnp.concatenate([p["wa1"], p["wc1"]], axis=1),           # [E, HA+HC]
        "b1": jnp.concatenate([p["ba1"], p["bc1"]], axis=1),           # [1, HA+HC]
        "wa2p": jnp.concatenate(
            [p["wa2"], jnp.zeros((HC, A), jnp.float32)], axis=0),      # [HA+HC, A]
        "ba2": p["ba2"],                                               # [1, A]
        "wc2p": jnp.concatenate(
            [jnp.zeros((1, HA), jnp.float32), p["wc2"].T], axis=1),    # [1, HA+HC]
        "bc2": p["bc2"],                                               # [1, 1]
    }


# ------------------------------ act() equivalent -----------------------------

def act(graph_embed, fused, xfer_mask, sample_key):
    """Mirrors ActorCritic.act: critic -> node softmax -> sample node ->
    actor(node embedding) -> masked softmax over xfers -> sample xfer."""
    N = graph_embed.shape[0]
    probs, logp, aux = actor_critic_forward(
        graph_embed, fused, xfer_mask[None, :].astype(jnp.float32))
    node_vs = aux[:N, 0]                               # [N] critic node values
    node_logprob = aux[N:, 0]                          # [N] log-softmax(values)
    node = jax.random.categorical(sample_key, node_logprob)

    # gather the sampled node's row (tiny XLA glue; everything stays log-space)
    xfer_logp_row = jax.lax.dynamic_slice_in_dim(logp, node, 1, axis=0)[0]  # [A]
    xfer_probs = jax.lax.dynamic_slice_in_dim(probs, node, 1, axis=0)       # [1, A]
    xfer = jax.random.categorical(jax.random.fold_in(sample_key, 1), xfer_logp_row)
    xfer_logprob = xfer_logp_row[xfer]
    # TODO(synk): node/xfer sampling could be moved in-kernel via
    # pltpu.prng_seed/prng_random_bits (Gumbel trick) to make act() one call.
    return node, xfer, xfer_logprob, xfer_probs, node_vs


# ------------------------- pure-JAX reference (check) -------------------------

def reference_forward(x, p, mask_bool):
    h_a = jnp.maximum(x @ p["wa1"] + p["ba1"], 0.0)
    logits = h_a @ p["wa2"] + p["ba2"]
    h_c = jnp.maximum(x @ p["wc1"] + p["bc1"], 0.0)
    vals = (h_c @ p["wc2"] + p["bc2"])[:, 0]
    m = mask_bool[None, :]
    masked = jnp.where(m, logits, NEG_INF)
    mx = jnp.max(masked, axis=-1, keepdims=True)
    e = jnp.exp(masked - mx) * m.astype(jnp.float32)
    s = jnp.maximum(jnp.sum(e, axis=-1, keepdims=True), 1e-30)
    probs = e / s
    logp = jnp.where(m, masked - mx - jnp.log(s), NEG_INF)
    node_logp = jax.nn.log_softmax(vals)
    return probs, logp, vals, node_logp


# ----------------------------------- main ------------------------------------

if __name__ == "__main__":
    # Small shapes consistent with the module's forward:
    # N nodes, graph_embed_size=32, actor_hidden=32, critic_hidden=32, 128 xfers.
    N, E, HA, HC, A = 8, 32, 32, 32, 128

    key = jax.random.PRNGKey(0)
    k_emb, k_par, k_mask, k_sample = jax.random.split(key, 4)

    graph_embed = jax.random.normal(k_emb, (N, E), jnp.float32)   # QGNN stand-in
    params = make_params(k_par, E, HA, HC, A)
    fused = fuse_params(params)
    xfer_mask = jax.random.uniform(k_mask, (A,)) > 0.5            # synthetic mask

    # --- run the fused kernel + sampling path ---
    node, xfer, xfer_logprob, xfer_probs, node_vs = act(
        graph_embed, fused, xfer_mask, k_sample)
    jax.block_until_ready((node, xfer, xfer_logprob, xfer_probs, node_vs))

    # --- validate kernel outputs against the pure-JAX reference ---
    probs_k, logp_k, aux_k = actor_critic_forward(
        graph_embed, fused, xfer_mask[None, :].astype(jnp.float32))
    probs_r, logp_r, vals_r, node_logp_r = reference_forward(
        graph_embed, params, xfer_mask)

    assert float(jnp.max(jnp.abs(probs_k - probs_r))) < 5e-3          # approx recip
    assert float(jnp.max(jnp.abs(
        jnp.where(xfer_mask[None, :], logp_k - logp_r, 0.0)))) < 2e-3
    assert float(jnp.max(jnp.abs(aux_k[:N, 0] - vals_r))) < 1e-3
    assert float(jnp.max(jnp.abs(aux_k[N:, 0] - node_logp_r))) < 1e-3

    # masked softmax sanity: zero mass on unavailable xfers, row sums to ~1
    assert xfer_probs.shape == (1, A)
    assert float(jnp.abs(jnp.sum(xfer_probs) - 1.0)) < 5e-3
    assert float(jnp.max(jnp.where(xfer_mask, 0.0, xfer_probs[0]))) == 0.0
    assert node_vs.shape == (N,)

    print("KERNEL_OK")
</pallas_src>

<mosaic_0001>
module attributes {stable_mosaic.version = 11 : i64} {
  func.func @_fused_actor_critic_kernel(%arg0: memref<8x32xf32, #tpu.memory_space<vmem>>, %arg1: memref<32x64xf32, #tpu.memory_space<vmem>>, %arg2: memref<1x64xf32, #tpu.memory_space<vmem>>, %arg3: memref<64x128xf32, #tpu.memory_space<vmem>>, %arg4: memref<1x128xf32, #tpu.memory_space<vmem>>, %arg5: memref<1x64xf32, #tpu.memory_space<vmem>>, %arg6: memref<1x1xf32, #tpu.memory_space<vmem>>, %arg7: memref<1x128xf32, #tpu.memory_space<vmem>>, %arg8: memref<8x128xf32, #tpu.memory_space<vmem>>, %arg9: memref<8x128xf32, #tpu.memory_space<vmem>>, %arg10: memref<16x128xf32, #tpu.memory_space<vmem>>) attributes {dimension_semantics = [], scalar_prefetch = 0 : i64, scratch_operands = 0 : i64, tpu.core_type = #tpu.core_type<tc>} {
    %c0 = arith.constant 0 : index
    %c0_0 = arith.constant 0 : index
    %0 = vector.load %arg0[%c0, %c0_0] : memref<8x32xf32, #tpu.memory_space<vmem>>, vector<8x32xf32>
    %c0_1 = arith.constant 0 : index
    %c0_2 = arith.constant 0 : index
    %1 = vector.load %arg1[%c0_1, %c0_2] : memref<32x64xf32, #tpu.memory_space<vmem>>, vector<32x64xf32>
    %cst = arith.constant dense<0.000000e+00> : vector<8x64xf32>
    %2 = tpu.matmul %0, %1, %cst {dimension_numbers = #tpu.dot_dimension_numbers<[1], [0], [0], [1], [0, 0, 1, 1], [], []>} : vector<8x32xf32>, vector<32x64xf32>, vector<8x64xf32> -> vector<8x64xf32>
    %c0_3 = arith.constant 0 : index
    %c0_4 = arith.constant 0 : index
    %3 = vector.load %arg2[%c0_3, %c0_4] : memref<1x64xf32, #tpu.memory_space<vmem>>, vector<1x64xf32>
    %4 = vector.broadcast %3 : vector<1x64xf32> to vector<8x64xf32>
    %5 = arith.addf %2, %4 : vector<8x64xf32>
    %cst_5 = arith.constant 0.000000e+00 : f32
    %6 = vector.broadcast %cst_5 : f32 to vector<8x64xf32>
    %7 = arith.maximumf %5, %6 : vector<8x64xf32>
    %c0_6 = arith.constant 0 : index
    %c0_7 = arith.constant 0 : index
    %8 = vector.load %arg3[%c0_6, %c0_7] : memref<64x128xf32, #tpu.memory_space<vmem>>, vector<64x128xf32>
    %cst_8 = arith.constant dense<0.000000e+00> : vector<8x128xf32>
    %9 = tpu.matmul %7, %8, %cst_8 {dimension_numbers = #tpu.dot_dimension_numbers<[1], [0], [0], [1], [0, 0, 1, 1], [], []>} : vector<8x64xf32>, vector<64x128xf32>, vector<8x128xf32> -> vector<8x128xf32>
    %c0_9 = arith.constant 0 : index
    %c0_10 = arith.constant 0 : index
    %10 = vector.load %arg4[%c0_9, %c0_10] : memref<1x128xf32, #tpu.memory_space<vmem>>, vector<1x128xf32>
    %11 = vector.broadcast %10 : vector<1x128xf32> to vector<8x128xf32>
    %12 = arith.addf %9, %11 : vector<8x128xf32>
    %c0_11 = arith.constant 0 : index
    %c0_12 = arith.constant 0 : index
    %13 = vector.load %arg5[%c0_11, %c0_12] : memref<1x64xf32, #tpu.memory_space<vmem>>, vector<1x64xf32>
    %14 = vector.broadcast %13 : vector<1x64xf32> to vector<8x64xf32>
    %15 = arith.mulf %7, %14 : vector<8x64xf32>
    %cst_13 = arith.constant dense<0.000000e+00> : vector<8xf32>
    %16 = vector.multi_reduction <add>, %15, %cst_13 [1] : vector<8x64xf32> to vector<8xf32>
    %17 = vector.shape_cast %16 : vector<8xf32> to vector<8x1xf32>
    %c0_14 = arith.constant 0 : index
    %c0_15 = arith.constant 0 : index
    %18 = vector.load %arg6[%c0_14, %c0_15] : memref<1x1xf32, #tpu.memory_space<vmem>>, vector<1x1xf32>
    %19 = vector.broadcast %18 : vector<1x1xf32> to vector<8x1xf32>
    %20 = arith.addf %17, %19 : vector<8x1xf32>
    %c0_16 = arith.constant 0 : index
    %c0_17 = arith.constant 0 : index
    %21 = vector.load %arg7[%c0_16, %c0_17] : memref<1x128xf32, #tpu.memory_space<vmem>>, vector<1x128xf32>
    %22 = vector.shape_cast %21 : vector<1x128xf32> to vector<1x128xf32>
    %23 = vector.broadcast %22 : vector<1x128xf32> to vector<8x128xf32>
    %cst_18 = arith.constant 0.000000e+00 : f32
    %24 = vector.broadcast %cst_18 : f32 to vector<8x128xf32>
    %25 = arith.cmpf ogt, %23, %24 : vector<8x128xf32>
    %cst_19 = arith.constant -1.000000e+30 : f32
    %26 = vector.broadcast %cst_19 : f32 to vector<8x128xf32>
    %27 = arith.select %25, %12, %26 : vector<8x128xi1>, vector<8x128xf32>
    %cst_20 = arith.constant dense<0xFF800000> : vector<8xf32>
    %28 = vector.multi_reduction <maximumf>, %27, %cst_20 [1] : vector<8x128xf32> to vector<8xf32>
    %29 = vector.shape_cast %28 : vector<8xf32> to vector<8x1xf32>
    %30 = vector.broadcast %29 : vector<8x1xf32> to vector<8x128xf32>
    %31 = arith.subf %27, %30 : vector<8x128xf32>
    %32 = math.exp %31 : vector<8x128xf32>
    %33 = arith.mulf %32, %23 : vector<8x128xf32>
    %cst_21 = arith.constant dense<0.000000e+00> : vector<8xf32>
    %34 = vector.multi_reduction <add>, %33, %cst_21 [1] : vector<8x128xf32> to vector<8xf32>
    %35 = vector.shape_cast %34 : vector<8xf32> to vector<8x1xf32>
    %cst_22 = arith.constant 1.000000e-30 : f32
    %36 = vector.broadcast %cst_22 : f32 to vector<8x1xf32>
    %37 = arith.maximumf %35, %36 : vector<8x1xf32>
    %38 = tpu.reciprocal %37 {approx = true} : vector<8x1xf32> -> vector<8x1xf32>
    %39 = vector.broadcast %38 : vector<8x1xf32> to vector<8x128xf32>
    %40 = arith.mulf %33, %39 : vector<8x128xf32>
    %c0_23 = arith.constant 0 : index
    %c0_24 = arith.constant 0 : index
    %41 = vector.load %arg8[%c0_23, %c0_24] : memref<8x128xf32, #tpu.memory_space<vmem>>, vector<8x128xf32>
    tpu.vector_store %arg8[%c0_23, %c0_24], %40 {strides = array<i32>} : memref<8x128xf32, #tpu.memory_space<vmem>>, vector<8x128xf32>,
    %42 = vector.broadcast %29 : vector<8x1xf32> to vector<8x128xf32>
    %43 = arith.subf %27, %42 : vector<8x128xf32>
    %44 = math.log %37 : vector<8x1xf32>
    %45 = vector.broadcast %44 : vector<8x1xf32> to vector<8x128xf32>
    %46 = arith.subf %43, %45 : vector<8x128xf32>
    %cst_25 = arith.constant -1.000000e+30 : f32
    %47 = vector.broadcast %cst_25 : f32 to vector<8x128xf32>
    %48 = arith.select %25, %46, %47 : vector<8x128xi1>, vector<8x128xf32>
    %c0_26 = arith.constant 0 : index
    %c0_27 = arith.constant 0 : index
    %49 = vector.load %arg9[%c0_26, %c0_27] : memref<8x128xf32, #tpu.memory_space<vmem>>, vector<8x128xf32>
    tpu.vector_store %arg9[%c0_26, %c0_27], %48 {strides = array<i32>} : memref<8x128xf32, #tpu.memory_space<vmem>>, vector<8x128xf32>,
    %cst_28 = arith.constant dense<0xFF800000> : vector<1xf32>
    %50 = vector.multi_reduction <maximumf>, %20, %cst_28 [0] : vector<8x1xf32> to vector<1xf32>
    %51 = vector.shape_cast %50 : vector<1xf32> to vector<1x1xf32>
    %52 = vector.broadcast %51 : vector<1x1xf32> to vector<8x1xf32>
    %53 = arith.subf %20, %52 : vector<8x1xf32>
    %54 = math.exp %53 : vector<8x1xf32>
    %cst_29 = arith.constant dense<0.000000e+00> : vector<1xf32>
    %55 = vector.multi_reduction <add>, %54, %cst_29 [0] : vector<8x1xf32> to vector<1xf32>
    %56 = vector.shape_cast %55 : vector<1xf32> to vector<1x1xf32>
    %57 = math.log %56 : vector<1x1xf32>
    %58 = arith.addf %51, %57 : vector<1x1xf32>
    %59 = vector.broadcast %58 : vector<1x1xf32> to vector<8x1xf32>
    %60 = arith.subf %20, %59 : vector<8x1xf32>
    %61 = vector.shape_cast %20 : vector<8x1xf32> to vector<8x1xf32>
    %62 = vector.broadcast %61 : vector<8x1xf32> to vector<8x128xf32>
    %c0_30 = arith.constant 0 : index
    %c0_31 = arith.constant 0 : index
    %63 = vector.load %arg10[%c0_30, %c0_31] : memref<16x128xf32, #tpu.memory_space<vmem>>, vector<8x128xf32>
    tpu.vector_store %arg10[%c0_30, %c0_31], %62 {strides = array<i32>} : memref<16x128xf32, #tpu.memory_space<vmem>>, vector<8x128xf32>,
    %64 = vector.shape_cast %60 : vector<8x1xf32> to vector<8x1xf32>
    %65 = vector.broadcast %64 : vector<8x1xf32> to vector<8x128xf32>
    %c8 = arith.constant 8 : index
    %c0_32 = arith.constant 0 : index
    %66 = vector.load %arg10[%c8, %c0_32] : memref<16x128xf32, #tpu.memory_space<vmem>>, vector<8x128xf32>
    tpu.vector_store %arg10[%c8, %c0_32], %65 {strides = array<i32>} : memref<16x128xf32, #tpu.memory_space<vmem>>, vector<8x128xf32>,
    return
  }
}

</mosaic_0001>

<llo_original>
// kernel: tpu_custom_call.1
$region0: #{tpu_custom_call.1}
  #allocation0 [shape = 'u32[]', space=smem, size = 0x4, offset = 0x4, fixed_abs, tag = 'smem constant byte address 0x4 - core index']
  #allocation1 [shape = 'u32[144,128]{1,0:T(1,128)}', space=vmem, size = 0x12000, scoped, tag = 'internal scratch']
  #allocation2 [shape = 'f32[1,1]{1,0:T(1,128)S(1)}', space=vmem, size = 0x200, scoped, tag = 'scoped memory for tpu_custom_call.1']
  %s0 = inlined_call_operand.hbm [shape: f32[8,32], index: 0, kind: input, shape index: {}]
  %s1 = inlined_call_operand.hbm [shape: f32[32,64], index: 1, kind: input, shape index: {}]
  %s2 = inlined_call_operand.vmem [shape: f32[1,64], index: 2, kind: input, shape index: {}]
  %s3 = inlined_call_operand.hbm [shape: f32[64,128], index: 3, kind: input, shape index: {}]
  %s4 = inlined_call_operand.vmem [shape: f32[1,128], index: 4, kind: input, shape index: {}]
  %s5 = inlined_call_operand.vmem [shape: f32[1,64], index: 5, kind: input, shape index: {}]
  %s6 = inlined_call_operand.<no memory space> [shape: f32[1,1], index: 6, kind: input, shape index: {}]
  %s7 = inlined_call_operand.vmem [shape: f32[1,128], index: 7, kind: input, shape index: {}]
  %s8 = inlined_call_operand.hbm [shape: f32[8,128], index: 8, kind: output, shape index: {0}]
  %s9 = inlined_call_operand.hbm [shape: f32[8,128], index: 9, kind: output, shape index: {1}]
  %s10 = inlined_call_operand.hbm [shape: f32[16,128], index: 10, kind: output, shape index: {2}]
  %11 = xla_tuple %s8, %s9, %s10
  %s12 = sld [smem:[#allocation0]]
  $region70: #{tpu_custom_call.1} parent=0
    _
  %s14 = ssub.s32 1, %s12
  %s15 = scalar_select 0, %s14, %s12
  %v16 = vstv %s6
  %17 = vst [vmem:[#allocation2] sm:$0x1] %v16
  $region1: #{tpu_custom_call.1} parent=0
    #allocation3 [shape = 'u8[4096]{0}', space=vmem, size = 0x1000, scoped, tag = 'input window, operand 0, single buffered']
    #allocation4 [shape = 's32[1]{0}', space=sflag, size = 0x4, scoped, tag = 'scoped memory for tpu_custom_call.1']
    #allocation5 [shape = 's32[1]{0}', space=sflag, size = 0x4, scoped, tag = 'scoped memory for tpu_custom_call.1']
    #allocation6 [shape = 'u8[16384]{0}', space=vmem, size = 0x4000, scoped, tag = 'input window, operand 1, single buffered']
    #allocation7 [shape = 's32[1]{0}', space=sflag, size = 0x4, scoped, tag = 'scoped memory for tpu_custom_call.1']
    #allocation8 [shape = 'u8[32768]{0}', space=vmem, size = 0x8000, scoped, tag = 'input window, operand 3, single buffered']
    #allocation9 [shape = 'u8[4096]{0}', space=vmem, size = 0x1000, scoped, tag = 'output window, operand 0, single buffered']
    #allocation10 [shape = 'u8[4096]{0}', space=vmem, size = 0x1000, scoped, tag = 'output window, operand 1, single buffered']
    #allocation11 [shape = 's32[1]{0}', space=sflag, size = 0x4, scoped, tag = 'scoped memory for tpu_custom_call.1']
    #allocation12 [shape = 'u8[8192]{0}', space=vmem, size = 0x2000, scoped, tag = 'output window, operand 2, single buffered']
    %18 = vsyncpa [#allocation4], 0
    %19 = vsyncpa [#allocation7], 0
    %20 = vsyncpa [#allocation5], 0
    %21 = vsyncpa [#allocation11], 0
    // Predicated region
    $region2: #{tpu_custom_call.1} parent=1 // pred_check
      _
    $region3: #{tpu_custom_call.1} parent=1 // pred_check_branch
      %23 = sbr.rel (0) target = $region5
    $region4: #{tpu_custom_call.1} parent=1 // pred_region
      %s25 = ssub.s32 128, 128
      %26 = vsyncadd [#allocation4], %s25
      %s28 = sshll.u32 [#allocation3], 4
      %s29 = int_to_ptr.vmem [resolvable:$true] %s28
      %31 = dma.hbm_to_vmem [thread:$0]  %s0, 128, %s29, [#allocation4]
    $region5: #{tpu_custom_call.1} parent=1 // pred_fallthru
      _
    // Predicated region
    $region6: #{tpu_custom_call.1} parent=1 // pred_check
      _
    $region7: #{tpu_custom_call.1} parent=1 // pred_check_branch
      %33 = sbr.rel (0) target = $region9
    $region8: #{tpu_custom_call.1} parent=1 // pred_region
      %s35 = ssub.s32 512, 512
      %36 = vsyncadd [#allocation7], %s35
      %s37 = sshll.u32 [#allocation6], 4
      %s38 = int_to_ptr.vmem [resolvable:$true] %s37
      %43 = dma.hbm_to_vmem [thread:$0]  %s1, 512, %s38, [#allocation7], 128, 128, 8
    $region9: #{tpu_custom_call.1} parent=1 // pred_fallthru
      _
    // Predicated region
    $region10: #{tpu_custom_call.1} parent=1 // pred_check
      _
    $region11: #{tpu_custom_call.1} parent=1 // pred_check_branch
      %45 = sbr.rel (0) target = $region13
    $region12: #{tpu_custom_call.1} parent=1 // pred_region
      _
    $region13: #{tpu_custom_call.1} parent=1 // pred_fallthru
      _
    // Predicated region
    $region14: #{tpu_custom_call.1} parent=1 // pred_check
      _
    $region15: #{tpu_custom_call.1} parent=1 // pred_check_branch
      %47 = sbr.rel (0) target = $region17
    $region16: #{tpu_custom_call.1} parent=1 // pred_region
      %s49 = ssub.s32 1024, 1024
      %50 = vsyncadd [#allocation7], %s49
      %s51 = sshll.u32 [#allocation8], 4
      %s52 = int_to_ptr.vmem [resolvable:$true] %s51
      %57 = dma.hbm_to_vmem [thread:$0]  %s3, 1024, %s52, [#allocation7], 128, 128, 8
    $region17: #{tpu_custom_call.1} parent=1 // pred_fallthru
      _
    // Predicated region
    $region18: #{tpu_custom_call.1} parent=1 // pred_check
      _
    $region19: #{tpu_custom_call.1} parent=1 // pred_check_branch
      %59 = sbr.rel (0) target = $region21
    $region20: #{tpu_custom_call.1} parent=1 // pred_region
      _
    $region21: #{tpu_custom_call.1} parent=1 // pred_fallthru
      _
    // Predicated region
    $region22: #{tpu_custom_call.1} parent=1 // pred_check
      _
    $region23: #{tpu_custom_call.1} parent=1 // pred_check_branch
      %61 = sbr.rel (0) target = $region25
    $region24: #{tpu_custom_call.1} parent=1 // pred_region
      _
    $region25: #{tpu_custom_call.1} parent=1 // pred_fallthru
      _
    // Predicated region
    $region26: #{tpu_custom_call.1} parent=1 // pred_check
      _
    $region27: #{tpu_custom_call.1} parent=1 // pred_check_branch
      %63 = sbr.rel (0) target = $region29
    $region28: #{tpu_custom_call.1} parent=1 // pred_region
      _
    $region29: #{tpu_custom_call.1} parent=1 // pred_fallthru
      _
    // Predicated region
    $region30: #{tpu_custom_call.1} parent=1 // pred_check
      _
    $region31: #{tpu_custom_call.1} parent=1 // pred_check_branch
      %65 = sbr.rel (0) target = $region33
    $region32: #{tpu_custom_call.1} parent=1 // pred_region
      _
    $region33: #{tpu_custom_call.1} parent=1 // pred_fallthru
      _
    // Predicated region
    $region34: #{tpu_custom_call.1} parent=1 // pred_check
      _
    $region35: #{tpu_custom_call.1} parent=1 // pred_check_branch
      %67 = sbr.rel (0) target = $region37
    $region36: #{tpu_custom_call.1} parent=1 // pred_region
      %68 = dma.done [#allocation4], 128
    $region37: #{tpu_custom_call.1} parent=1 // pred_fallthru
      _
    // Predicated region
    $region38: #{tpu_custom_call.1} parent=1 // pred_check
      _
    $region39: #{tpu_custom_call.1} parent=1 // pred_check_branch
      %70 = sbr.rel (0) target = $region41
    $region40: #{tpu_custom_call.1} parent=1 // pred_region
      %71 = dma.done [#allocation7], 512
    $region41: #{tpu_custom_call.1} parent=1 // pred_fallthru
      _
    // Predicated region
    $region42: #{tpu_custom_call.1} parent=1 // pred_check
      _
    $region43: #{tpu_custom_call.1} parent=1 // pred_check_branch
      %73 = sbr.rel (0) target = $region45
    $region44: #{tpu_custom_call.1} parent=1 // pred_region
      %74 = dma.done [#allocation7], 1024
    $region45: #{tpu_custom_call.1} parent=1 // pred_fallthru
      _
    %v75 = vld [vmem:[#allocation3] sm:$0xff]
    %v76 = vld [vmem:[#allocation6] sm:$0xff]
    %v77 = vld [vmem:[#allocation6 + $0x8] sm:$0xff]
    %v78 = vld [vmem:[#allocation6 + $0x10] sm:$0xff]
    %v79 = vld [vmem:[#allocation6 + $0x18] sm:$0xff]
    %v80 = vld [vmem:[%s2] sm:$0x1]
    %v82 = vlaneseq
    %v83 = vshrl.u32 %v82, 7
    %v84 = vsub.s32 0, %v83
    %v85 = vrot.slane %v80, %v84
    %vm87 = vcmask 261120
    %v89 = vsel %vm87, %v75, 0
    %91 = vmatprep.subr.mxu0 0.0
    %92 = vmatpush1.msra.mxu0 %v76
    %93 = vmatprep.subr.mxu0 0.0
    %94 = vmatpush1.msra.mxu0 %v77
    %95 = vmatprep.subr.mxu0 0.0
    %96 = vmatpush1.msra.mxu0 %v78
    %97 = vmatprep.subr.mxu0 0.0
    %98 = vmatpush1.msra.mxu0 %v79
    %99 = vmatprep.subr.mxu0 0.0
    %100 = vmatpush1.msra.mxu0 0.0
    %101 = vmatprep.subr.mxu0 0.0
    %102 = vmatpush1.msra.mxu0 0.0
    %103 = vmatprep.subr.mxu0 0.0
    %104 = vmatpush1.msra.mxu0 0.0
    %105 = vmatprep.subr.mxu0 0.0
    %106 = vmatpush1.msra.mxu0 0.0
    %107 = vmatprep.subr.mxu0 0.0
    %108 = vmatpush1.msra.mxu0 0.0
    %109 = vmatprep.subr.mxu0 0.0
    %110 = vmatpush1.msra.mxu0 0.0
    %111 = vmatprep.subr.mxu0 0.0
    %112 = vmatpush1.msra.mxu0 0.0
    %113 = vmatprep.subr.mxu0 0.0
    %114 = vmatpush1.msra.mxu0 0.0
    %115 = vmatprep.subr.mxu0 0.0
    %116 = vmatpush1.msra.mxu0 0.0
    %117 = vmatprep.subr.mxu0 0.0
    %118 = vmatpush1.msra.mxu0 0.0
    %119 = vmatprep.subr.mxu0 0.0
    %120 = vmatpush1.msra.mxu0 0.0
    %121 = vmatprep.subr.mxu0 0.0
    %122 = vmatpush1.msra.mxu0 0.0
    %123 = vmatprep.subr.mxu0 0.0
    %124 = vmatpush1.msra.mxu0 0.0
    %125 = vmatprep.subr.mxu0 0.0
    %126 = vmatpush1.msra.mxu0 0.0
    %127 = vmatprep.subr.mxu0 0.0
    %128 = vmatpush1.msra.mxu0 0.0
    %129 = vmatprep.subr.mxu0 0.0
    %130 = vmatpush1.msra.mxu0 0.0
    %131 = vmatprep.subr.mxu0 0.0
    %132 = vmatpush1.msra.mxu0 0.0
    %133 = vmatprep.subr.mxu0 0.0
    %134 = vmatpush1.msra.mxu0 0.0
    %135 = vmatprep.subr.mxu0 0.0
    %136 = vmatpush1.msra.mxu0 0.0
    %137 = vmatprep.subr.mxu0 0.0
    %138 = vmatpush1.msra.mxu0 0.0
    %139 = vmatprep.subr.mxu0 0.0
    %140 = vmatpush1.msra.mxu0 0.0
    %141 = vmatprep.subr.mxu0 0.0
    %142 = vmatpush1.msra.mxu0 0.0
    %143 = vmatprep.subr.mxu0 0.0
    %144 = vmatpush1.msra.mxu0 0.0
    %145 = vmatprep.subr.mxu0 0.0
    %146 = vmatpush1.msra.mxu0 0.0
    %147 = vmatprep.subr.mxu0 0.0
    %148 = vmatpush1.msra.mxu0 0.0
    %149 = vmatprep.subr.mxu0 0.0
    %150 = vmatpush1.msra.mxu0 0.0
    %151 = vmatprep.subr.mxu0 0.0
    %152 = vmatpush1.msra.mxu0 0.0
    %153 = vmatprep.subr.mxu0 0.0
    %154 = vmatpush1.msra.mxu0 0.0
    %155 = vmatprep.mubr.f32.mxu0 0.0
    %156 = vmatmul.mubr.f32.gmra.mrb[0].mxu0 %v89
    %v157 = vpop.f32.mrb[0].mxu0
    %v158 = vadd.f32 %v85, %v157
    %v159 = vpop.f32.mrb[0].mxu0
    %160 = vdwg.mxu0
    %v161 = vmax.f32 %v158, 0.0
    %v162 = vld [vmem:[#allocation8] sm:$0xff]
    %v163 = vld [vmem:[#allocation8 + $0x8] sm:$0xff]
    %v164 = vld [vmem:[#allocation8 + $0x10] sm:$0xff]
    %v165 = vld [vmem:[#allocation8 + $0x18] sm:$0xff]
    %v166 = vld [vmem:[#allocation8 + $0x20] sm:$0xff]
    %v167 = vld [vmem:[#allocation8 + $0x28] sm:$0xff]
    %v168 = vld [vmem:[#allocation8 + $0x30] sm:$0xff]
    %v169 = vld [vmem:[#allocation8 + $0x38] sm:$0xff]
    %v170 = vld [vmem:[%s4] sm:$0x1]
    %v172 = vlaneseq
    %v173 = vshrl.u32 %v172, 7
    %v174 = vsub.s32 0, %v173
    %v175 = vrot.slane %v170, %v174
    %vm177 = vcmask 523264
    %v179 = vsel %vm177, %v161, 0
    %181 = vmatprep.subr.mxu0 0.0
    %182 = vmatpush1.msra.mxu0 %v162
    %183 = vmatprep.subr.mxu0 0.0
    %184 = vmatpush1.msra.mxu0 %v163
    %185 = vmatprep.subr.mxu0 0.0
    %186 = vmatpush1.msra.mxu0 %v164
    %187 = vmatprep.subr.mxu0 0.0
    %188 = vmatpush1.msra.mxu0 %v165
    %189 = vmatprep.subr.mxu0 0.0
    %190 = vmatpush1.msra.mxu0 %v166
    %191 = vmatprep.subr.mxu0 0.0
    %192 = vmatpush1.msra.mxu0 %v167
    %193 = vmatprep.subr.mxu0 0.0
    %194 = vmatpush1.msra.mxu0 %v168
    %195 = vmatprep.subr.mxu0 0.0
    %196 = vmatpush1.msra.mxu0 %v169
    %197 = vmatprep.subr.mxu0 0.0
    %198 = vmatpush1.msra.mxu0 0.0
    %199 = vmatprep.subr.mxu0 0.0
    %200 = vmatpush1.msra.mxu0 0.0
    %201 = vmatprep.subr.mxu0 0.0
    %202 = vmatpush1.msra.mxu0 0.0
    %203 = vmatprep.subr.mxu0 0.0
    %204 = vmatpush1.msra.mxu0 0.0
    %205 = vmatprep.subr.mxu0 0.0
    %206 = vmatpush1.msra.mxu0 0.0
    %207 = vmatprep.subr.mxu0 0.0
    %208 = vmatpush1.msra.mxu0 0.0
    %209 = vmatprep.subr.mxu0 0.0
    %210 = vmatpush1.msra.mxu0 0.0
    %211 = vmatprep.subr.mxu0 0.0
    %212 = vmatpush1.msra.mxu0 0.0
    %213 = vmatprep.subr.mxu0 0.0
    %214 = vmatpush1.msra.mxu0 0.0
    %215 = vmatprep.subr.mxu0 0.0
    %216 = vmatpush1.msra.mxu0 0.0
    %217 = vmatprep.subr.mxu0 0.0
    %218 = vmatpush1.msra.mxu0 0.0
    %219 = vmatprep.subr.mxu0 0.0
    %220 = vmatpush1.msra.mxu0 0.0
    %221 = vmatprep.subr.mxu0 0.0
    %222 = vmatpush1.msra.mxu0 0.0
    %223 = vmatprep.subr.mxu0 0.0
    %224 = vmatpush1.msra.mxu0 0.0
    %225 = vmatprep.subr.mxu0 0.0
    %226 = vmatpush1.msra.mxu0 0.0
    %227 = vmatprep.subr.mxu0 0.0
    %228 = vmatpush1.msra.mxu0 0.0
    %229 = vmatprep.subr.mxu0 0.0
    %230 = vmatpush1.msra.mxu0 0.0
    %231 = vmatprep.subr.mxu0 0.0
    %232 = vmatpush1.msra.mxu0 0.0
    %233 = vmatprep.subr.mxu0 0.0
    %234 = vmatpush1.msra.mxu0 0.0
    %235 = vmatprep.subr.mxu0 0.0
    %236 = vmatpush1.msra.mxu0 0.0
    %237 = vmatprep.subr.mxu0 0.0
    %238 = vmatpush1.msra.mxu0 0.0
    %239 = vmatprep.subr.mxu0 0.0
    %240 = vmatpush1.msra.mxu0 0.0
    %241 = vmatprep.subr.mxu0 0.0
    %242 = vmatpush1.msra.mxu0 0.0
    %243 = vmatprep.subr.mxu0 0.0
    %244 = vmatpush1.msra.mxu0 0.0
    %245 = vmatprep.mubr.f32.mxu0 0.0
    %246 = vmatmul.mubr.f32.gmra.mrb[0].mxu0 %v179
    %v247 = vpop.f32.mrb[0].mxu0
    %v248 = vadd.f32 %v175, %v247
    %v249 = vpop.f32.mrb[0].mxu0
    %250 = vdwg.mxu0
    %v251 = vld [vmem:[%s5] sm:$0x1]
    %v253 = vlaneseq
    %v254 = vshrl.u32 %v253, 7
    %v255 = vsub.s32 0, %v254
    %v256 = vrot.slane %v251, %v255
    %v258 = vmul.f32 %v161, %v256
    %v259 = vsel %vm177, %v258, 0.0
    %260 = vadd.xlane.f32.xlu0 %v259
    %v261 = vpop.xlane.xlu0 %260
    %v262 = vld [vmem:[#allocation2] sm:$0x1]
    %v264 = vlaneseq
    %v265 = vshrl.u32 %v264, 7
    %v266 = vsub.s32 0, %v265
    %v267 = vrot.slane %v262, %v266
    %v269 = vadd.f32 %v261, %v267
    %v270 = vld [vmem:[%s7] sm:$0x1]
    %v272 = vlaneseq
    %v273 = vshrl.u32 %v272, 7
    %v274 = vsub.s32 0, %v273
    %v275 = vrot.slane %v270, %v274
    %vm277 = vcmp.gt.f32.partialorder %v275, 0.0
    %v278 = vsel %vm277, %v248, -1e+30
    %279 = vmax.xlane.f32.xlu0 %v278
    %v280 = vpop.xlane.xlu0 %279
    %v281 = vsub.f32 %v278, %v280
    %v282 = vmul.f32 %v281, 1.442695
    %v283 = vpow.pop %v282
    %v284 = vmul.f32 %v283, %v275
    %285 = vadd.xlane.f32.xlu0 %v284
    %v286 = vpop.xlane.xlu0 %285
    %v287 = vmax.f32 %v286, 1e-30
    %v288 = vrcp.pop %v287
    %v289 = vmul.f32 %v284, %v288
    %290 = vst [vmem:[#allocation9] sm:$0xff] %v289
    %v291 = vlog2.pop %v287
    %v292 = vmul.f32 %v291, 0.6931472
    %v293 = vsub.f32 %v281, %v292
    %v294 = vsel %vm277, %v293, -1e+30
    %295 = vst [vmem:[#allocation10] sm:$0xff] %v294
    %vm296 = vcmask 7168
    %v297 = vsel %vm296, %v269, -inf
    %v298 = vrot.slane %v297, 4
    %v299 = vmax.f32 %v297, %v298
    %v300 = vrot.slane %v299, 2
    %v301 = vmax.f32 %v299, %v300
    %v302 = vrot.slane %v301, 1
    %v303 = vmax.f32 %v301, %v302
    %v304 = vsub.f32 %v269, %v303
    %v305 = vmul.f32 %v304, 1.442695
    %v306 = vpow.pop %v305
    %v307 = vsel %vm296, %v306, 0.0
    %v308 = vrot.slane %v307, 4
    %v309 = vadd.f32 %v307, %v308
    %v310 = vrot.slane %v309, 2
    %v311 = vadd.f32 %v309, %v310
    %v312 = vrot.slane %v311, 1
    %v313 = vadd.f32 %v311, %v312
    %v314 = vlog2.pop %v313
    %v315 = vmul.f32 %v314, 0.6931472
    %v316 = vadd.f32 %v303, %v315
    %v317 = vsub.f32 %v269, %v316
    %319 = vset.pattern.permute.xlu0 0
    %320 = vperm.xlu0 %319, %v269
    %v321 = vpop.permute.xlu0 %320
    %323 = vst [vmem:[#allocation12] sm:$0xff] %v321
    %325 = vset.pattern.permute.xlu0 0
    %326 = vperm.xlu0 %325, %v317
    %v327 = vpop.permute.xlu0 %326
    %329 = vst [vmem:[#allocation12 + $0x8] sm:$0xff] %v327
    // Predicated region
    $region46: #{tpu_custom_call.1} parent=1 // pred_check
      _
    $region47: #{tpu_custom_call.1} parent=1 // pred_check_branch
      %331 = sbr.rel (0) target = $region49
    $region48: #{tpu_custom_call.1} parent=1 // pred_region
      %s333 = ssub.s32 128, 128
      %334 = vsyncadd [#allocation5], %s333
      %s336 = sshll.u32 [#allocation9], 4
      %s337 = int_to_ptr.vmem [resolvable:$true] %s336
      %339 = dma.vmem_to_hbm [thread:$0]  %s337, 128, %s8, [#allocation5]
    $region49: #{tpu_custom_call.1} parent=1 // pred_fallthru
      _
    // Predicated region
    $region50: #{tpu_custom_call.1} parent=1 // pred_check
      _
    $region51: #{tpu_custom_call.1} parent=1 // pred_check_branch
      %341 = sbr.rel (0) target = $region53
    $region52: #{tpu_custom_call.1} parent=1 // pred_region
      %s343 = ssub.s32 128, 128
      %344 = vsyncadd [#allocation11], %s343
      %s346 = sshll.u32 [#allocation10], 4
      %s347 = int_to_ptr.vmem [resolvable:$true] %s346
      %349 = dma.vmem_to_hbm [thread:$0]  %s347, 128, %s9, [#allocation11]
    $region53: #{tpu_custom_call.1} parent=1 // pred_fallthru
      _
    // Predicated region
    $region54: #{tpu_custom_call.1} parent=1 // pred_check
      _
    $region55: #{tpu_custom_call.1} parent=1 // pred_check_branch
      %351 = sbr.rel (0) target = $region57
    $region56: #{tpu_custom_call.1} parent=1 // pred_region
      %s353 = ssub.s32 256, 256
      %354 = vsyncadd [#allocation11], %s353
      %s355 = sshll.u32 [#allocation12], 4
      %s356 = int_to_ptr.vmem [resolvable:$true] %s355
      %361 = dma.vmem_to_hbm [thread:$0]  %s356, 256, %s10, [#allocation11], 128, 128, 8
    $region57: #{tpu_custom_call.1} parent=1 // pred_fallthru
      _
    // Predicated region
    $region58: #{tpu_custom_call.1} parent=1 // pred_check
      _
    $region59: #{tpu_custom_call.1} parent=1 // pred_check_branch
      %363 = sbr.rel (0) target = $region61
    $region60: #{tpu_custom_call.1} parent=1 // pred_region
      %364 = dma.done [#allocation5], 128
    $region61: #{tpu_custom_call.1} parent=1 // pred_fallthru
      _
    // Predicated region
    $region62: #{tpu_custom_call.1} parent=1 // pred_check
      _
    $region63: #{tpu_custom_call.1} parent=1 // pred_check_branch
      %366 = sbr.rel (0) target = $region65
    $region64: #{tpu_custom_call.1} parent=1 // pred_region
      %367 = dma.done [#allocation11], 128
    $region65: #{tpu_custom_call.1} parent=1 // pred_fallthru
      _
    // Predicated region
    $region66: #{tpu_custom_call.1} parent=1 // pred_check
      _
    $region67: #{tpu_custom_call.1} parent=1 // pred_check_branch
      %369 = sbr.rel (0) target = $region69
    $region68: #{tpu_custom_call.1} parent=1 // pred_region
      %370 = dma.done [#allocation11], 256
    $region69: #{tpu_custom_call.1} parent=1 // pred_fallthru
      _
    %371 = vsyncpa [#allocation4], 1
    %372 = vsyncpa [#allocation7], 1
    %373 = vsyncpa [#allocation5], 1
    %374 = vsyncpa [#allocation11], 1

</llo_original>
